<compile_context>
chip_gen: v7x
topology: tpu7x:2x2x1
jax: 0.10.0
libtpu: 0.0.40
codegen_flags: <defaults>
</compile_context>

<pallas_src>
import functools

import jax
import jax.numpy as jnp
from jax.experimental import pallas as pl
from jax.experimental.pallas import tpu as pltpu


_INV_SQRT2 = 0.7071067811865476


def _round_up(v, m):
    return (v + m - 1) // m * m


def _erf(x, approx_recip):
    # Abramowitz & Stegun 7.1.26: max abs error ~1.5e-7 (below f32 noise).
    a1, a2, a3, a4, a5 = 0.254829592, -0.284496736, 1.421413741, -1.453152027, 1.061405429
    p = 0.3275911
    ax = jnp.abs(x)
    denom = 1.0 + p * ax
    if approx_recip:
        # EUP approximate reciprocal: frees VALU slots on fast-MXU parts; only used
        # on the relaxed-tolerance low-precision path.
        t = pl.reciprocal(denom, approx=True)
    else:
        t = 1.0 / denom
    poly = ((((a5 * t + a4) * t + a3) * t + a2) * t + a1) * t
    y = 1.0 - poly * jnp.exp(-ax * ax)
    return jnp.where(x < 0, -y, y)


def _gelu_exact(x, approx_recip):
    # PyTorch nn.GELU() default (erf-based, not tanh approximation).
    return 0.5 * x * (1.0 + _erf(x * _INV_SQRT2, approx_recip))


def mlp_kernel(x_ref, w1_ref, b1_ref, w2_ref, b2_ref, o_ref, acc_ref, *, approx_recip):
    # Grid: (M tiles ["parallel"], H tiles ["arbitrary"])
    # x_ref : [TM, F_in]    row tile (batch+seq collapsed), constant along K
    # w1_ref: [F_in, TH]    fc1 weight slab (channels-in first)
    # b1_ref: [1, TH]
    # w2_ref: [TH, F_out]   fc2 weight slab
    # b2_ref: [1, F_out]
    # o_ref : [TM, F_out]   resident across K (same block index)
    # acc_ref: [TM, F_out]  f32 accumulator scratch
    k = pl.program_id(1)

    @pl.when(k == 0)
    def _():
        acc_ref[...] = jnp.zeros_like(acc_ref)

    cd = w1_ref.dtype  # MXU compute dtype (bf16 on the low-precision path)
    h = jnp.dot(x_ref[...].astype(cd), w1_ref[...], preferred_element_type=jnp.float32)
    h = h + b1_ref[...].astype(jnp.float32)
    h = _gelu_exact(h, approx_recip)
    # Dropout(p=0.0) / eval mode -> identity (nothing to do).
    acc_ref[...] += jnp.dot(h.astype(w2_ref.dtype), w2_ref[...],
                            preferred_element_type=jnp.float32)

    @pl.when(k == pl.num_programs(1) - 1)
    def _():
        o_ref[...] = (acc_ref[...] + b2_ref[...].astype(jnp.float32)).astype(o_ref.dtype)


def _tpu_vmem_capacity_bytes():
    try:
        return int(pltpu.get_tpu_info().vmem_capacity_bytes)
    except Exception:
        return 64 * 1024 * 1024  # conservative: v7x per-TensorCore physical VMEM


def prepare_mlp_params(w1, b1, w2, b2, *, block_h=512, compute_dtype=None):
    """One-time parameter prep (do NOT call per forward step).

    - Transposes weights to channels-in-first layout for the MXU.
    - Pads the hidden dim to a multiple of the K tile (gelu(0)=0 and zero w2 rows
      make the padding exact).
    - Optionally casts weights to a bf16 compute dtype (biases stay f32 for accuracy).
    w1: [H, F_in], b1: [H], w2: [F_out, H], b2: [F_out]   (PyTorch nn.Linear layout)
    """
    hidden, f_in = w1.shape
    f_out, hidden2 = w2.shape
    assert hidden2 == hidden and b1.shape == (hidden,) and b2.shape == (f_out,)
    dt = compute_dtype if compute_dtype is not None else w1.dtype

    if hidden <= block_h:
        th = hidden                      # single K step, full-extent lane dim is legal
    else:
        th = max(128, (block_h // 128) * 128)   # tiled lane dim must be a 128-multiple
    hidden_pad = _round_up(hidden, th)

    w1_t = jnp.transpose(w1, (1, 0)).astype(dt)   # [F_in, H]
    w2_t = jnp.transpose(w2, (1, 0)).astype(dt)   # [H, F_out]
    b1_r = b1.reshape(1, hidden)                  # keep biases in original (f32) dtype
    b2_r = b2.reshape(1, f_out)
    if hidden_pad != hidden:
        w1_t = jnp.pad(w1_t, ((0, 0), (0, hidden_pad - hidden)))
        b1_r = jnp.pad(b1_r, ((0, 0), (0, hidden_pad - hidden)))
        w2_t = jnp.pad(w2_t, ((0, hidden_pad - hidden), (0, 0)))

    return dict(w1_t=w1_t, b1=b1_r, w2_t=w2_t, b2=b2_r, th=th,
                hidden=hidden, hidden_pad=hidden_pad, f_in=f_in, f_out=f_out)


def mlp_forward(x, params, *, block_m=None, low_precision=False, vmem_limit_bytes=None):
    """Fused Mlp forward.  x: [..., F_in]  ->  [..., F_out]."""
    lead = x.shape[:-1]
    f_in, f_out = params["f_in"], params["f_out"]
    hidden, hidden_pad, th = params["hidden"], params["hidden_pad"], params["th"]
    assert x.shape[-1] == f_in

    vmem_cap = _tpu_vmem_capacity_bytes()
    if vmem_limit_bytes is None:
        vmem_limit_bytes = min(int(vmem_cap * 0.75), 112 * 1024 * 1024)
    if block_m is None:
        # Bigger tiles on 128 MiB-VMEM parts (v5e/v6e); conservative on v7x (64 MiB/TC).
        block_m = 512 if vmem_cap >= 96 * 1024 * 1024 else 256

    m = 1
    for d in lead:
        m *= d
    x2 = x.reshape(m, f_in)

    # Sublane packing granularity depends on the activation dtype.
    sub = max(8, 32 // jnp.dtype(x.dtype).itemsize)

    tm = min(block_m, _round_up(m, sub))
    # Ensure >=2 M tiles when M allows it (v7x has 2 TensorCores; a length-1
    # "parallel" axis would leave one idle).
    if -(-m // tm) < 2 and _round_up(m, sub) >= 2 * sub:
        tm = _round_up(-(-m // 2), sub)

    m_pad = _round_up(m, tm)
    if m_pad != m:
        # Prefer a divisor tile over padding (avoids an extra HBM round trip of x),
        # but never shrink the tile below half the target size.
        for cand in range(tm, sub - 1, -sub):
            if m % cand == 0 and cand * 2 >= tm:
                tm, m_pad = cand, m
                break
    if m_pad != m:
        x2 = jnp.pad(x2, ((0, m_pad - m), (0, 0)))

    w1_t, b1_r, w2_t, b2_r = params["w1_t"], params["b1"], params["w2_t"], params["b2"]

    cost = pl.CostEstimate(
        flops=2 * m * hidden * (f_in + f_out),
        transcendentals=m * hidden,                       # one exp per erf element
        bytes_accessed=int(x2.size * x2.dtype.itemsize
                           + w1_t.size * w1_t.dtype.itemsize
                           + w2_t.size * w2_t.dtype.itemsize
                           + b1_r.size * b1_r.dtype.itemsize
                           + b2_r.size * b2_r.dtype.itemsize
                           + m_pad * f_out * x.dtype.itemsize),
    )

    out = pl.pallas_call(
        functools.partial(mlp_kernel, approx_recip=low_precision),
        out_shape=jax.ShapeDtypeStruct((m_pad, f_out), x.dtype),
        grid=(m_pad // tm, hidden_pad // th),
        in_specs=[
            pl.BlockSpec((tm, f_in), lambda i, k: (i, 0)),     # activations: M-tiled
            pl.BlockSpec((f_in, th), lambda i, k: (0, k)),     # fc1 weight slab
            pl.BlockSpec((1, th), lambda i, k: (0, k)),        # fc1 bias slab
            pl.BlockSpec((th, f_out), lambda i, k: (k, 0)),    # fc2 weight slab
            pl.BlockSpec((1, f_out), lambda i, k: (0, 0)),     # fc2 bias (resident)
        ],
        out_specs=pl.BlockSpec((tm, f_out), lambda i, k: (i, 0)),   # lane-dense output
        scratch_shapes=[pltpu.VMEM((tm, f_out), jnp.float32)],
        compiler_params=pltpu.CompilerParams(
            dimension_semantics=("parallel", "arbitrary"),
            vmem_limit_bytes=vmem_limit_bytes,
        ),
        cost_estimate=cost,
    )(x2, w1_t, b1_r, w2_t, b2_r)

    if m_pad != m:
        out = out[:m]          # padded rows carry gelu(b1)@w2+b2; must be sliced off
    return out.reshape(*lead, f_out)


def mlp_ref(x, w1, b1, w2, b2):
    """Pure-JAX reference with exact PyTorch Mlp semantics (eval / drop=0)."""
    h = jnp.dot(x, w1.T, precision=jax.lax.Precision.HIGHEST) + b1
    h = jax.nn.gelu(h, approximate=False)     # nn.GELU() default = exact erf GELU
    y = jnp.dot(h, w2.T, precision=jax.lax.Precision.HIGHEST) + b2
    return y


if __name__ == "__main__":
    # Small shapes consistent with the module; feature dims are multiples of 128 so
    # the output store path is unmasked (lane-dense).
    B, N = 2, 8
    in_features, hidden_features = 128, 512       # ViT-style 4x hidden ratio
    out_features = in_features                    # Mlp default: out_features = in_features

    key = jax.random.PRNGKey(0)
    kx, k1, k2, k3, k4 = jax.random.split(key, 5)
    x = jax.random.normal(kx, (B, N, in_features), dtype=jnp.float32)
    # Deterministic synthetic init mimicking nn.Linear's +-1/sqrt(fan_in) scale.
    s1 = 1.0 / (in_features ** 0.5)
    s2 = 1.0 / (hidden_features ** 0.5)
    w1 = s1 * jax.random.uniform(k1, (hidden_features, in_features), jnp.float32, -1.0, 1.0)
    b1 = s1 * jax.random.uniform(k2, (hidden_features,), jnp.float32, -1.0, 1.0)
    w2 = s2 * jax.random.uniform(k3, (out_features, hidden_features), jnp.float32, -1.0, 1.0)
    b2 = s2 * jax.random.uniform(k4, (out_features,), jnp.float32, -1.0, 1.0)

    ref = mlp_ref(x, w1, b1, w2, b2)

    # --- full-precision path (f32 operands, exact erf, exact reciprocal) ---
    params_f32 = prepare_mlp_params(w1, b1, w2, b2)      # one-time prep
    out = jax.block_until_ready(mlp_forward(x, params_f32))
    assert out.shape == (B, N, out_features), out.shape
    assert jnp.allclose(out, ref, rtol=5e-5, atol=5e-5), "f32 path mismatch vs reference"

    # --- low-precision path (bf16 MXU operands + approx EUP reciprocal) ---
    # Expected mixed-precision drift vs the HIGHEST-precision reference -> loose tol.
    params_bf16 = prepare_mlp_params(w1, b1, w2, b2, compute_dtype=jnp.bfloat16)
    out_lp = jax.block_until_ready(mlp_forward(x, params_bf16, low_precision=True))
    assert out_lp.shape == (B, N, out_features), out_lp.shape
    assert jnp.allclose(out_lp, ref, rtol=3e-2, atol=3e-2), "bf16 path mismatch vs reference"

    print("KERNEL_OK")
</pallas_src>

<mosaic_0001>
module attributes {stable_mosaic.version = 11 : i64} {
  func.func @mlp_kernel(%arg0: i32, %arg1: i32, %arg2: memref<8x128xf32, #tpu.memory_space<vmem>>, %arg3: memref<128x512xf32, #tpu.memory_space<vmem>>, %arg4: memref<1x512xf32, #tpu.memory_space<vmem>>, %arg5: memref<512x128xf32, #tpu.memory_space<vmem>>, %arg6: memref<1x128xf32, #tpu.memory_space<vmem>>, %arg7: memref<8x128xf32, #tpu.memory_space<vmem>>, %arg8: memref<8x128xf32, #tpu.memory_space<vmem>>) attributes {dimension_semantics = [#tpu.dimension_semantics<parallel>, #tpu.dimension_semantics<arbitrary>], iteration_bounds = array<i64: 2, 1>, scalar_prefetch = 0 : i64, scratch_operands = 1 : i64, tpu.core_type = #tpu.core_type<tc>, window_params = [{transform_indices = @transform_0, window_bounds = array<i64: 8, 128>}, {transform_indices = @transform_1, window_bounds = array<i64: 128, 512>}, {transform_indices = @transform_2, window_bounds = array<i64: 1, 512>}, {transform_indices = @transform_3, window_bounds = array<i64: 512, 128>}, {pipeline_mode = #tpu.pipeline_mode<synchronous>, transform_indices = @transform_4, window_bounds = array<i64: 1, 128>}, {transform_indices = @transform_5, window_bounds = array<i64: 8, 128>}]} {
    %c0_i32 = arith.constant 0 : i32
    %0 = arith.cmpi eq, %arg1, %c0_i32 : i32
    %1 = arith.extui %0 : i1 to i32
    %c0_i32_0 = arith.constant 0 : i32
    %2 = arith.cmpi ne, %1, %c0_i32_0 : i32
    scf.if %2 {
      %cst_30 = arith.constant 0.000000e+00 : f32
      %57 = vector.broadcast %cst_30 : f32 to vector<8x128xf32>
      %c0_31 = arith.constant 0 : index
      %c0_32 = arith.constant 0 : index
      %58 = vector.load %arg8[%c0_31, %c0_32] : memref<8x128xf32, #tpu.memory_space<vmem>>, vector<8x128xf32>
      tpu.vector_store %arg8[%c0_31, %c0_32], %57 {strides = array<i32>} : memref<8x128xf32, #tpu.memory_space<vmem>>, vector<8x128xf32>,
    } else {
    }
    %c0 = arith.constant 0 : index
    %c0_1 = arith.constant 0 : index
    %3 = vector.load %arg2[%c0, %c0_1] : memref<8x128xf32, #tpu.memory_space<vmem>>, vector<8x128xf32>
    %c0_2 = arith.constant 0 : index
    %c0_3 = arith.constant 0 : index
    %4 = vector.load %arg3[%c0_2, %c0_3] : memref<128x512xf32, #tpu.memory_space<vmem>>, vector<128x512xf32>
    %cst = arith.constant dense<0.000000e+00> : vector<8x512xf32>
    %5 = tpu.matmul %3, %4, %cst {dimension_numbers = #tpu.dot_dimension_numbers<[1], [0], [0], [1], [0, 0, 1, 1], [], []>} : vector<8x128xf32>, vector<128x512xf32>, vector<8x512xf32> -> vector<8x512xf32>
    %c0_4 = arith.constant 0 : index
    %c0_5 = arith.constant 0 : index
    %6 = vector.load %arg4[%c0_4, %c0_5] : memref<1x512xf32, #tpu.memory_space<vmem>>, vector<1x512xf32>
    %7 = vector.broadcast %6 : vector<1x512xf32> to vector<8x512xf32>
    %8 = arith.addf %5, %7 : vector<8x512xf32>
    %cst_6 = arith.constant 5.000000e-01 : f32
    %9 = vector.broadcast %cst_6 : f32 to vector<8x512xf32>
    %10 = arith.mulf %9, %8 : vector<8x512xf32>
    %cst_7 = arith.constant 0.707106769 : f32
    %11 = vector.broadcast %cst_7 : f32 to vector<8x512xf32>
    %12 = arith.mulf %8, %11 : vector<8x512xf32>
    %13 = math.absf %12 : vector<8x512xf32>
    %cst_8 = arith.constant 0.327591091 : f32
    %14 = vector.broadcast %cst_8 : f32 to vector<8x512xf32>
    %15 = arith.mulf %14, %13 : vector<8x512xf32>
    %cst_9 = arith.constant 1.000000e+00 : f32
    %16 = vector.broadcast %cst_9 : f32 to vector<8x512xf32>
    %17 = arith.addf %16, %15 : vector<8x512xf32>
    %cst_10 = arith.constant 1.000000e+00 : f32
    %18 = vector.broadcast %cst_10 : f32 to vector<8x512xf32>
    %19 = arith.divf %18, %17 : vector<8x512xf32>
    %cst_11 = arith.constant 1.06140542 : f32
    %20 = vector.broadcast %cst_11 : f32 to vector<8x512xf32>
    %21 = arith.mulf %20, %19 : vector<8x512xf32>
    %cst_12 = arith.constant -1.45315206 : f32
    %22 = vector.broadcast %cst_12 : f32 to vector<8x512xf32>
    %23 = arith.addf %21, %22 : vector<8x512xf32>
    %24 = arith.mulf %23, %19 : vector<8x512xf32>
    %cst_13 = arith.constant 1.42141378 : f32
    %25 = vector.broadcast %cst_13 : f32 to vector<8x512xf32>
    %26 = arith.addf %24, %25 : vector<8x512xf32>
    %27 = arith.mulf %26, %19 : vector<8x512xf32>
    %cst_14 = arith.constant -0.284496725 : f32
    %28 = vector.broadcast %cst_14 : f32 to vector<8x512xf32>
    %29 = arith.addf %27, %28 : vector<8x512xf32>
    %30 = arith.mulf %29, %19 : vector<8x512xf32>
    %cst_15 = arith.constant 0.254829586 : f32
    %31 = vector.broadcast %cst_15 : f32 to vector<8x512xf32>
    %32 = arith.addf %30, %31 : vector<8x512xf32>
    %33 = arith.mulf %32, %19 : vector<8x512xf32>
    %cst_16 = arith.constant 0.000000e+00 : f32
    %34 = vector.broadcast %cst_16 : f32 to vector<8x512xf32>
    %35 = arith.subf %34, %13 : vector<8x512xf32>
    %36 = arith.mulf %35, %13 : vector<8x512xf32>
    %37 = math.exp %36 : vector<8x512xf32>
    %38 = arith.mulf %33, %37 : vector<8x512xf32>
    %cst_17 = arith.constant 1.000000e+00 : f32
    %39 = vector.broadcast %cst_17 : f32 to vector<8x512xf32>
    %40 = arith.subf %39, %38 : vector<8x512xf32>
    %cst_18 = arith.constant 0.000000e+00 : f32
    %41 = vector.broadcast %cst_18 : f32 to vector<8x512xf32>
    %42 = arith.cmpf olt, %12, %41 : vector<8x512xf32>
    %cst_19 = arith.constant 0.000000e+00 : f32
    %43 = vector.broadcast %cst_19 : f32 to vector<8x512xf32>
    %44 = arith.subf %43, %40 : vector<8x512xf32>
    %45 = arith.select %42, %44, %40 : vector<8x512xi1>, vector<8x512xf32>
    %cst_20 = arith.constant 1.000000e+00 : f32
    %46 = vector.broadcast %cst_20 : f32 to vector<8x512xf32>
    %47 = arith.addf %46, %45 : vector<8x512xf32>
    %48 = arith.mulf %10, %47 : vector<8x512xf32>
    %c0_21 = arith.constant 0 : index
    %c0_22 = arith.constant 0 : index
    %49 = vector.load %arg8[%c0_21, %c0_22] : memref<8x128xf32, #tpu.memory_space<vmem>>, vector<8x128xf32>
    %c0_23 = arith.constant 0 : index
    %c0_24 = arith.constant 0 : index
    %50 = vector.load %arg5[%c0_23, %c0_24] : memref<512x128xf32, #tpu.memory_space<vmem>>, vector<512x128xf32>
    %cst_25 = arith.constant dense<0.000000e+00> : vector<8x128xf32>
    %51 = tpu.matmul %48, %50, %cst_25 {dimension_numbers = #tpu.dot_dimension_numbers<[1], [0], [0], [1], [0, 0, 1, 1], [], []>} : vector<8x512xf32>, vector<512x128xf32>, vector<8x128xf32> -> vector<8x128xf32>
    %52 = arith.addf %49, %51 : vector<8x128xf32>
    %c0_26 = arith.constant 0 : index
    %c0_27 = arith.constant 0 : index
    %53 = vector.load %arg8[%c0_26, %c0_27] : memref<8x128xf32, #tpu.memory_space<vmem>>, vector<8x128xf32>
    tpu.vector_store %arg8[%c0_26, %c0_27], %52 {strides = array<i32>} : memref<8x128xf32, #tpu.memory_space<vmem>>, vector<8x128xf32>,
    %c0_i32_28 = arith.constant 0 : i32
    %54 = arith.cmpi eq, %arg1, %c0_i32_28 : i32
    %55 = arith.extui %54 : i1 to i32
    %c0_i32_29 = arith.constant 0 : i32
    %56 = arith.cmpi ne, %55, %c0_i32_29 : i32
    scf.if %56 {
      %c0_30 = arith.constant 0 : index
      %c0_31 = arith.constant 0 : index
      %57 = vector.load %arg8[%c0_30, %c0_31] : memref<8x128xf32, #tpu.memory_space<vmem>>, vector<8x128xf32>
      %c0_32 = arith.constant 0 : index
      %c0_33 = arith.constant 0 : index
      %58 = vector.load %arg6[%c0_32, %c0_33] : memref<1x128xf32, #tpu.memory_space<vmem>>, vector<1x128xf32>
      %59 = vector.broadcast %58 : vector<1x128xf32> to vector<8x128xf32>
      %60 = arith.addf %57, %59 : vector<8x128xf32>
      %c0_34 = arith.constant 0 : index
      %c0_35 = arith.constant 0 : index
      %61 = vector.load %arg7[%c0_34, %c0_35] : memref<8x128xf32, #tpu.memory_space<vmem>>, vector<8x128xf32>
      tpu.vector_store %arg7[%c0_34, %c0_35], %60 {strides = array<i32>} : memref<8x128xf32, #tpu.memory_space<vmem>>, vector<8x128xf32>,
    } else {
    }
    return
  }
  func.func @transform_0(%arg0: i32, %arg1: i32) -> (i32, i32) {
    %c0_i32 = arith.constant 0 : i32
    %c0_i32_0 = arith.constant 0 : i32
    return %arg0, %c0_i32 : i32, i32
  }
  func.func @transform_1(%arg0: i32, %arg1: i32) -> (i32, i32) {
    %c0_i32 = arith.constant 0 : i32
    %c0_i32_0 = arith.constant 0 : i32
    return %c0_i32, %arg1 : i32, i32
  }
  func.func @transform_2(%arg0: i32, %arg1: i32) -> (i32, i32) {
    %c0_i32 = arith.constant 0 : i32
    %c0_i32_0 = arith.constant 0 : i32
    return %c0_i32, %arg1 : i32, i32
  }
  func.func @transform_3(%arg0: i32, %arg1: i32) -> (i32, i32) {
    %c0_i32 = arith.constant 0 : i32
    %c0_i32_0 = arith.constant 0 : i32
    return %arg1, %c0_i32 : i32, i32
  }
  func.func @transform_4(%arg0: i32, %arg1: i32) -> (i32, i32) {
    %c0_i32 = arith.constant 0 : i32
    %c0_i32_0 = arith.constant 0 : i32
    %c0_i32_1 = arith.constant 0 : i32
    return %c0_i32, %c0_i32_0 : i32, i32
  }
  func.func @transform_5(%arg0: i32, %arg1: i32) -> (i32, i32) {
    %c0_i32 = arith.constant 0 : i32
    %c0_i32_0 = arith.constant 0 : i32
    return %arg0, %c0_i32 : i32, i32
  }
}

</mosaic_0001>

<llo_original>
// kernel: tpu_custom_call.1
$region0: #{tpu_custom_call.1}
  #allocation0 [shape = 'u32[]', space=smem, size = 0x4, offset = 0x4, fixed_abs, tag = 'smem constant byte address 0x4 - core index']
  #allocation1 [shape = 'u32[144,128]{1,0:T(1,128)}', space=vmem, size = 0x12000, scoped, tag = 'internal scratch']
  #allocation2 [shape = 'f32[8,128]{1,0:T(8,128)}', space=vmem, size = 0x1000, scoped, tag = 'scratch operand']
  %s0 = inlined_call_operand.hbm [shape: f32[16,128], index: 0, kind: input, shape index: {}]
  %s1 = inlined_call_operand.hbm [shape: f32[128,512], index: 1, kind: input, shape index: {}]
  %s2 = inlined_call_operand.vmem [shape: f32[1,512], index: 2, kind: input, shape index: {}]
  %s3 = inlined_call_operand.hbm [shape: f32[512,128], index: 3, kind: input, shape index: {}]
  %s4 = inlined_call_operand.vmem [shape: f32[1,128], index: 4, kind: input, shape index: {}]
  %s5 = inlined_call_operand.hbm [shape: f32[16,128], index: 5, kind: output, shape index: {}]
  %s6 = sld [smem:[#allocation0]]
  $region73: #{tpu_custom_call.1} parent=0
    _
  %s8 = ssub.s32 1, %s6
  %s9 = scalar_select 0, %s8, %s6
  $region1: #{tpu_custom_call.1} parent=0
    #allocation3 [shape = 'u8[8192]{0}', space=vmem, size = 0x2000, scoped, tag = 'input window, operand 0']
    #allocation4 [shape = 's32[2]{0}', space=sflag, size = 0x8, scoped, tag = 'scoped memory for tpu_custom_call.1']
    #allocation5 [shape = 's32[2]{0}', space=sflag, size = 0x8, scoped, tag = 'scoped memory for tpu_custom_call.1']
    #allocation6 [shape = 'u8[262144]{0}', space=vmem, size = 0x40000, scoped, tag = 'input window, operand 1, single buffered']
    #allocation7 [shape = 's32[1]{0}', space=sflag, size = 0x4, scoped, tag = 'scoped memory for tpu_custom_call.1']
    #allocation8 [shape = 'u8[262144]{0}', space=vmem, size = 0x40000, scoped, tag = 'input window, operand 3, single buffered']
    #allocation9 [shape = 'u8[8192]{0}', space=vmem, size = 0x2000, scoped, tag = 'output window, operand 0']
    %10 = vsyncpa [#allocation4], 0
    %s11 = scalar_lea.sflag [#allocation4], 1
    %12 = vsyncpa %s11, 0
    %13 = vsyncpa [#allocation7], 0
    %14 = vsyncpa [#allocation5], 0
    %s15 = scalar_lea.sflag [#allocation5], 1
    %16 = vsyncpa %s15, 0
    loop: start=0, step=1, limit=4
    $region2: #{tpu_custom_call.1} parent=1 // loop_pre_header
      _
    $region3: #{tpu_custom_call.1} parent=1 // loop_header
      %s18 = sphi 0, %s22
      %p19 = scmp.ge.s32.totalorder %s18, 4
      %s25 = sphi 0, %s37
      %s26 = sphi 0, %s33
      %s27 = sphi 0, %s25
      %s28 = sphi 0, %s26
      %s29 = sphi 0, %s27
      %s30 = sphi 0, %s28
      %s40 = sphi 0, %s42
      %s43 = sphi 0, %s40
      %s44 = sphi 0, %s43
      %s60 = sphi 0, %s44
      %s66 = sphi 0, %s68
      %s69 = sphi 0, %s66
      %s70 = sphi 0, %s69
      %s86 = sphi 0, %s70
      %s92 = sphi 0, %s94
      %s95 = sphi 0, %s92
      %s96 = sphi 0, %s95
      %s112 = sphi 0, %s96
      %s118 = sphi 0, %s120
      %s121 = sphi 0, %s118
      %s122 = sphi 0, %s121
      %s138 = sphi 0, %s122
      %s142 = sphi 0, %s142
      %s144 = sphi 0, %s142
      %s145 = sphi 0, %s144
      %s159 = sphi 0, %s145
      %s165 = sphi 0, %s167
      %s168 = sphi 0, %s165
      %s169 = sphi 0, %s168
      %s185 = sphi 0, %s169
    $region4: #{tpu_custom_call.1} parent=1 // loop_header_branch
      %21 = sbr.rel (%p19) target = $region8
    $region5: #{tpu_custom_call.1} parent=1 // loop_body
      %s23 = ssub.s32 %s18, 1
      %s24 = ssub.s32 %s18, 2
      %s31 = sadd.s32 1, %s26
      %p32 = scmp.ge.s32.totalorder %s31, 1
      %s33 = scalar_select %p32, 0, %s31
      %s34 = sadd.s32 1, %s25
      %s35 = scalar_select %p32, %s34, %s25
      %p36 = scmp.ge.s32.totalorder %s35, 2
      %s37 = scalar_select %p36, 0, %s35
      %s38 = ssub.s32 %s25, %s37
      %p39 = scmp.eq.s32.totalorder %s38, 0
      %s41 = sadd.s32 %s40, 1
      %s42 = scalar_select %p39, %s40, %s41
      %p45 = pneg %p39
      %p46 = scmp.eq.s32.totalorder %s18, 1
      %p47 = por %p45, %p46
      %p48 = scmp.ne.s32.totalorder %s40, %s43
      %p49 = scmp.eq.s32.totalorder %s18, 0
      %p50 = por %p48, %p49
      %p51 = scmp.ne.s32.totalorder %s40, %s43
      %p52 = scmp.eq.s32.totalorder %s23, 1
      %p53 = por %p51, %p52
      %p54 = scmp.ne.s32.totalorder %s43, %s44
      %p55 = scmp.eq.s32.totalorder %s23, 0
      %p56 = por %p54, %p55
      %p57 = scmp.ne.s32.totalorder %s43, %s44
      %p58 = scmp.eq.s32.totalorder %s24, 1
      %p59 = por %p57, %p58
      %p61 = scmp.ne.s32.totalorder %s44, %s60
      %p62 = scmp.eq.s32.totalorder %s24, 0
      %p63 = por %p61, %p62
      %s64 = ssub.s32 %s26, %s33
      %p65 = scmp.eq.s32.totalorder %s64, 0
      %s67 = sadd.s32 %s66, 1
      %s68 = scalar_select %p65, %s66, %s67
      %p71 = pneg %p65
      %p72 = scmp.eq.s32.totalorder %s18, 1
      %p73 = por %p71, %p72
      %p74 = scmp.ne.s32.totalorder %s66, %s69
      %p75 = scmp.eq.s32.totalorder %s18, 0
      %p76 = por %p74, %p75
      %p77 = scmp.ne.s32.totalorder %s66, %s69
      %p78 = scmp.eq.s32.totalorder %s23, 1
      %p79 = por %p77, %p78
      %p80 = scmp.ne.s32.totalorder %s69, %s70
      %p81 = scmp.eq.s32.totalorder %s23, 0
      %p82 = por %p80, %p81
      %p83 = scmp.ne.s32.totalorder %s69, %s70
      %p84 = scmp.eq.s32.totalorder %s24, 1
      %p85 = por %p83, %p84
      %p87 = scmp.ne.s32.totalorder %s70, %s86
      %p88 = scmp.eq.s32.totalorder %s24, 0
      %p89 = por %p87, %p88
      %s90 = ssub.s32 %s26, %s33
      %p91 = scmp.eq.s32.totalorder %s90, 0
      %s93 = sadd.s32 %s92, 1
      %s94 = scalar_select %p91, %s92, %s93
      %p97 = pneg %p91
      %p98 = scmp.eq.s32.totalorder %s18, 1
      %p99 = por %p97, %p98
      %p100 = scmp.ne.s32.totalorder %s92, %s95
      %p101 = scmp.eq.s32.totalorder %s18, 0
      %p102 = por %p100, %p101
      %p103 = scmp.ne.s32.totalorder %s92, %s95
      %p104 = scmp.eq.s32.totalorder %s23, 1
      %p105 = por %p103, %p104
      %p106 = scmp.ne.s32.totalorder %s95, %s96
      %p107 = scmp.eq.s32.totalorder %s23, 0
      %p108 = por %p106, %p107
      %p109 = scmp.ne.s32.totalorder %s95, %s96
      %p110 = scmp.eq.s32.totalorder %s24, 1
      %p111 = por %p109, %p110
      %p113 = scmp.ne.s32.totalorder %s96, %s112
      %p114 = scmp.eq.s32.totalorder %s24, 0
      %p115 = por %p113, %p114
      %s116 = ssub.s32 %s26, %s33
      %p117 = scmp.eq.s32.totalorder %s116, 0
      %s119 = sadd.s32 %s118, 1
      %s120 = scalar_select %p117, %s118, %s119
      %p123 = pneg %p117
      %p124 = scmp.eq.s32.totalorder %s18, 1
      %p125 = por %p123, %p124
      %p126 = scmp.ne.s32.totalorder %s118, %s121
      %p127 = scmp.eq.s32.totalorder %s18, 0
      %p128 = por %p126, %p127
      %p129 = scmp.ne.s32.totalorder %s118, %s121
      %p130 = scmp.eq.s32.totalorder %s23, 1
      %p131 = por %p129, %p130
      %p132 = scmp.ne.s32.totalorder %s121, %s122
      %p133 = scmp.eq.s32.totalorder %s23, 0
      %p134 = por %p132, %p133
      %p135 = scmp.ne.s32.totalorder %s121, %s122
      %p136 = scmp.eq.s32.totalorder %s24, 1
      %p137 = por %p135, %p136
      %p139 = scmp.ne.s32.totalorder %s122, %s138
      %p140 = scmp.eq.s32.totalorder %s24, 0
      %p141 = por %p139, %p140
      %s143 = sadd.s32 %s142, 1
      %p146 = scmp.eq.s32.totalorder %s18, 1
      %p147 = scmp.ne.s32.totalorder %s142, %s144
      %p148 = scmp.eq.s32.totalorder %s18, 0
      %p149 = por %p147, %p148
      %p150 = scmp.ne.s32.totalorder %s142, %s144
      %p151 = scmp.eq.s32.totalorder %s23, 1
      %p152 = por %p150, %p151
      %p153 = scmp.ne.s32.totalorder %s144, %s145
      %p154 = scmp.eq.s32.totalorder %s23, 0
      %p155 = por %p153, %p154
      %p156 = scmp.ne.s32.totalorder %s144, %s145
      %p157 = scmp.eq.s32.totalorder %s24, 1
      %p158 = por %p156, %p157
      %p160 = scmp.ne.s32.totalorder %s145, %s159
      %p161 = scmp.eq.s32.totalorder %s24, 0
      %p162 = por %p160, %p161
      %s163 = ssub.s32 %s25, %s37
      %p164 = scmp.eq.s32.totalorder %s163, 0
      %s166 = sadd.s32 %s165, 1
      %s167 = scalar_select %p164, %s165, %s166
      %p170 = pneg %p164
      %p171 = scmp.eq.s32.totalorder %s18, 1
      %p172 = por %p170, %p171
      %p173 = scmp.ne.s32.totalorder %s165, %s168
      %p174 = scmp.eq.s32.totalorder %s18, 0
      %p175 = por %p173, %p174
      %p176 = scmp.ne.s32.totalorder %s165, %s168
      %p177 = scmp.eq.s32.totalorder %s23, 1
      %p178 = por %p176, %p177
      %p179 = scmp.ne.s32.totalorder %s168, %s169
      %p180 = scmp.eq.s32.totalorder %s23, 0
      %p181 = por %p179, %p180
      %p182 = scmp.ne.s32.totalorder %s168, %s169
      %p183 = scmp.eq.s32.totalorder %s24, 1
      %p184 = por %p182, %p183
      %p186 = scmp.ne.s32.totalorder %s169, %s185
      %p187 = scmp.eq.s32.totalorder %s24, 0
      %p188 = por %p186, %p187
      %p189 = scmp.le.s32.totalorder 1, %s18
      %p190 = scmp.lt.s32.totalorder %s18, 3
      %p191 = pnand %p189, %p190
      %p192 = pneg %p191
      // Predicated region
      $region9: #{tpu_custom_call.1} parent=5 // pred_check
        _
      $region10: #{tpu_custom_call.1} parent=5 // pred_check_branch
        %194 = sbr.rel (%p191) target = $region12
      $region11: #{tpu_custom_call.1} parent=5 // pred_region
        %s195 = ssub.s32 %s18, 1
        // Predicated region
        $region13: #{tpu_custom_call.1} parent=11 // pred_check
          %p196 = pneg %p82
        $region14: #{tpu_custom_call.1} parent=11 // pred_check_branch
          %198 = sbr.rel (%p196) target = $region16
        $region15: #{tpu_custom_call.1} parent=11 // pred_region
          %s199 = smul.u32 4, %s28
          %s201 = ssub.s32 8192, 8192
          %202 = vsyncadd [#allocation7], %s201
          %s203 = smul.addr %s199, 128
          %s204 = scalar_lea.hbm %s1, %s203
          %s205 = sshll.u32 [#allocation6], 4
          %s206 = int_to_ptr.vmem [resolvable:$true] %s205
          %211 = dma.hbm_to_vmem [thread:$0]  %s204, 8192, %s206, [#allocation7], 512, 512, 32
        $region16: #{tpu_custom_call.1} parent=11 // pred_fallthru
          _
        // Predicated region
        $region17: #{tpu_custom_call.1} parent=11 // pred_check
          %p212 = pneg %p108
        $region18: #{tpu_custom_call.1} parent=11 // pred_check_branch
          %214 = sbr.rel (%p212) target = $region20
        $region19: #{tpu_custom_call.1} parent=11 // pred_region
          %s215 = smul.u32 4, %s28
          %p216 = scmp.lt.s32.totalorder %s215, 3
          %s217 = scalar_select %p216, %s215, 3
          %s218 = scalar_lea.vmem %s2, %s217
          %s219 = smul.u32 4, %s28
        $region20: #{tpu_custom_call.1} parent=11 // pred_fallthru
          _
        // Predicated region
        $region21: #{tpu_custom_call.1} parent=11 // pred_check
          %p220 = pneg %p134
        $region22: #{tpu_custom_call.1} parent=11 // pred_check_branch
          %222 = sbr.rel (%p220) target = $region24
        $region23: #{tpu_custom_call.1} parent=11 // pred_region
          %s223 = smul.u32 64, %s28
          %s225 = ssub.s32 8192, 8192
          %226 = vsyncadd [#allocation7], %s225
          %s227 = smul.addr %s223, 128
          %s228 = scalar_lea.hbm %s3, %s227
          %s229 = sshll.u32 [#allocation8], 4
          %s230 = int_to_ptr.vmem [resolvable:$true] %s229
          %235 = dma.hbm_to_vmem [thread:$0]  %s228, 8192, %s230, [#allocation7], 128, 128, 8
        $region24: #{tpu_custom_call.1} parent=11 // pred_fallthru
          _
        // Predicated region
        $region25: #{tpu_custom_call.1} parent=11 // pred_check
          %p236 = pneg %p155
        $region26: #{tpu_custom_call.1} parent=11 // pred_check_branch
          %238 = sbr.rel (%p236) target = $region28
        $region27: #{tpu_custom_call.1} parent=11 // pred_region
          _
        $region28: #{tpu_custom_call.1} parent=11 // pred_fallthru
          _
      $region12: #{tpu_custom_call.1} parent=5 // pred_fallthru
        _
      %p239 = scmp.lt.s32.totalorder %s18, 2
      // Predicated region
      $region29: #{tpu_custom_call.1} parent=5 // pred_check
        %p240 = pneg %p239
      $region30: #{tpu_custom_call.1} parent=5 // pred_check_branch
        %242 = sbr.rel (%p240) target = $region32
      $region31: #{tpu_custom_call.1} parent=5 // pred_region
        // Predicated region
        $region33: #{tpu_custom_call.1} parent=31 // pred_check
          %p243 = pneg %p50
        $region34: #{tpu_custom_call.1} parent=31 // pred_check_branch
          %245 = sbr.rel (%p243) target = $region36
        $region35: #{tpu_custom_call.1} parent=31 // pred_region
          %s246 = sand.u32 %s40, 1
          %s247 = scalar_lea.sflag [#allocation4], %s246
          %s248 = sand.u32 %s40, 1
          %s249 = smul.addr %s248, 8
          %s250 = scalar_lea.vmem [#allocation3], %s249
          %s252 = ssub.s32 128, 128
          %253 = vsyncadd %s247, %s252
          %s254 = smul.addr %s25, 128
          %s255 = scalar_lea.hbm %s0, %s254
          %s257 = sshll.u32 %s250, 4
          %s258 = int_to_ptr.vmem [resolvable:$true] %s257
          %260 = dma.hbm_to_vmem [thread:$0]  %s255, 128, %s258, %s247
        $region36: #{tpu_custom_call.1} parent=31 // pred_fallthru
          _
      $region32: #{tpu_custom_call.1} parent=5 // pred_fallthru
        _
      %p261 = scmp.le.s32.totalorder 1, %s18
      %p262 = scmp.lt.s32.totalorder %s18, 3
      %p263 = pnand %p261, %p262
      %p264 = pneg %p263
      // Predicated region
      $region37: #{tpu_custom_call.1} parent=5 // pred_check
        _
      $region38: #{tpu_custom_call.1} parent=5 // pred_check_branch
        %266 = sbr.rel (%p263) target = $region40
      $region39: #{tpu_custom_call.1} parent=5 // pred_region
        %s267 = ssub.s32 %s18, 1
        %s268 = sand.u32 %s43, 1
        %s269 = scalar_lea.sflag [#allocation4], %s268
        %s270 = sand.u32 %s43, 1
        %s271 = smul.addr %s270, 8
        %s272 = scalar_lea.vmem [#allocation3], %s271
        // Predicated region
        $region41: #{tpu_custom_call.1} parent=39 // pred_check
          %p273 = pneg %p56
        $region42: #{tpu_custom_call.1} parent=39 // pred_check_branch
          %275 = sbr.rel (%p273) target = $region44
        $region43: #{tpu_custom_call.1} parent=39 // pred_region
          %276 = dma.done %s269, 128
        $region44: #{tpu_custom_call.1} parent=39 // pred_fallthru
          _
        // Predicated region
        $region45: #{tpu_custom_call.1} parent=39 // pred_check
          %p277 = pneg %p82
        $region46: #{tpu_custom_call.1} parent=39 // pred_check_branch
          %279 = sbr.rel (%p277) target = $region48
        $region47: #{tpu_custom_call.1} parent=39 // pred_region
          %280 = dma.done [#allocation7], 8192
        $region48: #{tpu_custom_call.1} parent=39 // pred_fallthru
          _
        // Predicated region
        $region49: #{tpu_custom_call.1} parent=39 // pred_check
          %p281 = pneg %p134
        $region50: #{tpu_custom_call.1} parent=39 // pred_check_branch
          %283 = sbr.rel (%p281) target = $region52
        $region51: #{tpu_custom_call.1} parent=39 // pred_region
          %284 = dma.done [#allocation7], 8192
        $region52: #{tpu_custom_call.1} parent=39 // pred_fallthru
          _
        %s285 = sand.u32 %s43, 1
        %s286 = scalar_lea.sflag [#allocation4], %s285
        %s287 = sand.u32 %s43, 1
        %s288 = smul.addr %s287, 8
        %s289 = scalar_lea.vmem [#allocation3], %s288
        %p290 = pneg %p56
        %p291 = pneg %p53
        %p292 = pneg %p82
        %p293 = pneg %p79
        %s294 = smul.u32 4, %s28
        %p295 = scmp.lt.s32.totalorder %s294, 3
        %s296 = scalar_select %p295, %s294, 3
        %s297 = scalar_lea.vmem %s2, %s296
        %p298 = pneg %p108
        %p299 = pneg %p105
        %p300 = pneg %p134
        %p301 = pneg %p131
        %p302 = pneg %p155
        %p303 = pneg %p152
        %p304 = pneg %p181
        %p305 = pneg %p178
        %s306 = sand.u32 %s168, 1
        %s307 = scalar_lea.sflag [#allocation5], %s306
        %s308 = sand.u32 %s168, 1
        %s309 = smul.addr %s308, 8
        %s310 = scalar_lea.vmem [#allocation9], %s309
        %s311 = smul.u32 4, %s28
        %s312 = smul.u32 4, %s28
        %p313 = scmp.lt.s32.totalorder %s312, 3
        %s314 = scalar_select %p313, %s312, 3
        %s315 = scalar_lea.vmem %s2, %s314
        %s316 = smul.u32 4, %s28
        %s317 = smul.u32 64, %s28
        %p318 = scmp.eq.s32.totalorder %s28, 0
        // Predicated region
        $region53: #{tpu_custom_call.1} parent=39 // pred_check
          %p319 = pneg %p318
        $region54: #{tpu_custom_call.1} parent=39 // pred_check_branch
          %321 = sbr.rel (%p319) target = $region56
        $region55: #{tpu_custom_call.1} parent=39 // pred_region
          %322 = vst [vmem:[#allocation2] sm:$0xff] 0.0
        $region56: #{tpu_custom_call.1} parent=39 // pred_fallthru
          _
        %v323 = vld [vmem:[%s272] sm:$0xff]
        %v324 = vld [vmem:[#allocation6] sm:$0xff]
        %v325 = vld [vmem:[#allocation6 + $0x8] sm:$0xff]
        %v326 = vld [vmem:[#allocation6 + $0x10] sm:$0xff]
        %v327 = vld [vmem:[#allocation6 + $0x18] sm:$0xff]
        %v328 = vld [vmem:[#allocation6 + $0x20] sm:$0xff]
        %v329 = vld [vmem:[#allocation6 + $0x28] sm:$0xff]
        %v330 = vld [vmem:[#allocation6 + $0x30] sm:$0xff]
        %v331 = vld [vmem:[#allocation6 + $0x38] sm:$0xff]
        %v332 = vld [vmem:[#allocation6 + $0x40] sm:$0xff]
        %v333 = vld [vmem:[#allocation6 + $0x48] sm:$0xff]
        %v334 = vld [vmem:[#allocation6 + $0x50] sm:$0xff]
        %v335 = vld [vmem:[#allocation6 + $0x58] sm:$0xff]
        %v336 = vld [vmem:[#allocation6 + $0x60] sm:$0xff]
        %v337 = vld [vmem:[#allocation6 + $0x68] sm:$0xff]
        %v338 = vld [vmem:[#allocation6 + $0x70] sm:$0xff]
        %v339 = vld [vmem:[#allocation6 + $0x78] sm:$0xff]
        %v340 = vld [vmem:[#allocation6 + $0x80] sm:$0xff]
        %v341 = vld [vmem:[#allocation6 + $0x88] sm:$0xff]
        %v342 = vld [vmem:[#allocation6 + $0x90] sm:$0xff]
        %v343 = vld [vmem:[#allocation6 + $0x98] sm:$0xff]
        %v344 = vld [vmem:[#allocation6 + $0xa0] sm:$0xff]
        %v345 = vld [vmem:[#allocation6 + $0xa8] sm:$0xff]
        %v346 = vld [vmem:[#allocation6 + $0xb0] sm:$0xff]
        %v347 = vld [vmem:[#allocation6 + $0xb8] sm:$0xff]
        %v348 = vld [vmem:[#allocation6 + $0xc0] sm:$0xff]
        %v349 = vld [vmem:[#allocation6 + $0xc8] sm:$0xff]
        %v350 = vld [vmem:[#allocation6 + $0xd0] sm:$0xff]
        %v351 = vld [vmem:[#allocation6 + $0xd8] sm:$0xff]
        %v352 = vld [vmem:[#allocation6 + $0xe0] sm:$0xff]
        %v353 = vld [vmem:[#allocation6 + $0xe8] sm:$0xff]
        %v354 = vld [vmem:[#allocation6 + $0xf0] sm:$0xff]
        %v355 = vld [vmem:[#allocation6 + $0xf8] sm:$0xff]
        %v356 = vld [vmem:[#allocation6 + $0x100] sm:$0xff]
        %v357 = vld [vmem:[#allocation6 + $0x108] sm:$0xff]
        %v358 = vld [vmem:[#allocation6 + $0x110] sm:$0xff]
        %v359 = vld [vmem:[#allocation6 + $0x118] sm:$0xff]
        %v360 = vld [vmem:[#allocation6 + $0x120] sm:$0xff]
        %v361 = vld [vmem:[#allocation6 + $0x128] sm:$0xff]
        %v362 = vld [vmem:[#allocation6 + $0x130] sm:$0xff]
        %v363 = vld [vmem:[#allocation6 + $0x138] sm:$0xff]
        %v364 = vld [vmem:[#allocation6 + $0x140] sm:$0xff]
        %v365 = vld [vmem:[#allocation6 + $0x148] sm:$0xff]
        %v366 = vld [vmem:[#allocation6 + $0x150] sm:$0xff]
        %v367 = vld [vmem:[#allocation6 + $0x158] sm:$0xff]
        %v368 = vld [vmem:[#allocation6 + $0x160] sm:$0xff]
        %v369 = vld [vmem:[#allocation6 + $0x168] sm:$0xff]
        %v370 = vld [vmem:[#allocation6 + $0x170] sm:$0xff]
        %v371 = vld [vmem:[#allocation6 + $0x178] sm:$0xff]
        %v372 = vld [vmem:[#allocation6 + $0x180] sm:$0xff]
        %v373 = vld [vmem:[#allocation6 + $0x188] sm:$0xff]
        %v374 = vld [vmem:[#allocation6 + $0x190] sm:$0xff]
        %v375 = vld [vmem:[#allocation6 + $0x198] sm:$0xff]
        %v376 = vld [vmem:[#allocation6 + $0x1a0] sm:$0xff]
        %v377 = vld [vmem:[#allocation6 + $0x1a8] sm:$0xff]
        %v378 = vld [vmem:[#allocation6 + $0x1b0] sm:$0xff]
        %v379 = vld [vmem:[#allocation6 + $0x1b8] sm:$0xff]
        %v380 = vld [vmem:[#allocation6 + $0x1c0] sm:$0xff]
        %v381 = vld [vmem:[#allocation6 + $0x1c8] sm:$0xff]
        %v382 = vld [vmem:[#allocation6 + $0x1d0] sm:$0xff]
        %v383 = vld [vmem:[#allocation6 + $0x1d8] sm:$0xff]
        %v384 = vld [vmem:[#allocation6 + $0x1e0] sm:$0xff]
        %v385 = vld [vmem:[#allocation6 + $0x1e8] sm:$0xff]
        %v386 = vld [vmem:[#allocation6 + $0x1f0] sm:$0xff]
        %v387 = vld [vmem:[#allocation6 + $0x1f8] sm:$0xff]
        %v388 = vld [vmem:[%s315] sm:$0xf]
        %v390 = vlaneseq
        %v391 = vshrl.u32 %v390, 7
        %v392 = vsub.s32 0, %v391
        %v393 = vrot.slane %v388, %v392
        %v394 = vlaneseq
        %v395 = vshrl.u32 %v394, 7
        %v396 = vsub.s32 1, %v395
        %v397 = vrot.slane %v388, %v396
        %v398 = vlaneseq
        %v399 = vshrl.u32 %v398, 7
        %v400 = vsub.s32 2, %v399
        %v401 = vrot.slane %v388, %v400
        %v402 = vlaneseq
        %v403 = vshrl.u32 %v402, 7
        %v404 = vsub.s32 3, %v403
        %v405 = vrot.slane %v388, %v404
        %410 = vmatprep.subr.mxu0 %v325
        %411 = vmatpush1.msra.mxu0 %v324
        %412 = vmatprep.subr.mxu0 %v329
        %413 = vmatpush1.msra.mxu0 %v328
        %414 = vmatprep.subr.mxu0 %v333
        %415 = vmatpush1.msra.mxu0 %v332
        %416 = vmatprep.subr.mxu0 %v337
        %417 = vmatpush1.msra.mxu0 %v336
        %418 = vmatprep.subr.mxu0 %v341
        %419 = vmatpush1.msra.mxu0 %v340
        %420 = vmatprep.subr.mxu0 %v345
        %421 = vmatpush1.msra.mxu0 %v344
        %422 = vmatprep.subr.mxu0 %v349
        %423 = vmatpush1.msra.mxu0 %v348
        %424 = vmatprep.subr.mxu0 %v353
        %425 = vmatpush1.msra.mxu0 %v352
        %426 = vmatprep.subr.mxu0 %v357
        %427 = vmatpush1.msra.mxu0 %v356
        %428 = vmatprep.subr.mxu0 %v361
        %429 = vmatpush1.msra.mxu0 %v360
        %430 = vmatprep.subr.mxu0 %v365
        %431 = vmatpush1.msra.mxu0 %v364
        %432 = vmatprep.subr.mxu0 %v369
        %433 = vmatpush1.msra.mxu0 %v368
        %434 = vmatprep.subr.mxu0 %v373
        %435 = vmatpush1.msra.mxu0 %v372
        %436 = vmatprep.subr.mxu0 %v377
        %437 = vmatpush1.msra.mxu0 %v376
        %438 = vmatprep.subr.mxu0 %v381
        %439 = vmatpush1.msra.mxu0 %v380
        %440 = vmatprep.subr.mxu0 %v385
        %441 = vmatpush1.msra.mxu0 %v384
        %442 = vmatprep.subr.mxu0 0.0
        %443 = vmatpush1.msra.mxu0 0.0
        %444 = vmatprep.subr.mxu0 0.0
        %445 = vmatpush1.msra.mxu0 0.0
        %446 = vmatprep.subr.mxu0 0.0
        %447 = vmatpush1.msra.mxu0 0.0
        %448 = vmatprep.subr.mxu0 0.0
        %449 = vmatpush1.msra.mxu0 0.0
        %450 = vmatprep.subr.mxu0 0.0
        %451 = vmatpush1.msra.mxu0 0.0
        %452 = vmatprep.subr.mxu0 0.0
        %453 = vmatpush1.msra.mxu0 0.0
        %454 = vmatprep.subr.mxu0 0.0
        %455 = vmatpush1.msra.mxu0 0.0
        %456 = vmatprep.subr.mxu0 0.0
        %457 = vmatpush1.msra.mxu0 0.0
        %458 = vmatprep.subr.mxu0 0.0
        %459 = vmatpush1.msra.mxu0 0.0
        %460 = vmatprep.subr.mxu0 0.0
        %461 = vmatpush1.msra.mxu0 0.0
        %462 = vmatprep.subr.mxu0 0.0
        %463 = vmatpush1.msra.mxu0 0.0
        %464 = vmatprep.subr.mxu0 0.0
        %465 = vmatpush1.msra.mxu0 0.0
        %466 = vmatprep.subr.mxu0 0.0
        %467 = vmatpush1.msra.mxu0 0.0
        %468 = vmatprep.subr.mxu0 0.0
        %469 = vmatpush1.msra.mxu0 0.0
        %470 = vmatprep.subr.mxu0 0.0
        %471 = vmatpush1.msra.mxu0 0.0
        %472 = vmatprep.subr.mxu0 0.0
        %473 = vmatpush1.msra.mxu0 0.0
        %474 = vmatprep.mubr.f32.mxu0 0.0
        %475 = vmatmul.mubr.f32.gmra.mrb[0].mxu0 %v323
        %v476 = vpop.f32.mrb[0].mxu0
        %v477 = vadd.f32 %v393, %v476
        %v478 = vpop.f32.mrb[0].mxu0
        %v479 = vadd.f32 %v397, %v478
        %480 = vdwg.mxu0
        %481 = vmatprep.subr.mxu0 %v327
        %482 = vmatpush1.msra.mxu0 %v326
        %483 = vmatprep.subr.mxu0 %v331
        %484 = vmatpush1.msra.mxu0 %v330
        %485 = vmatprep.subr.mxu0 %v335
        %486 = vmatpush1.msra.mxu0 %v334
        %487 = vmatprep.subr.mxu0 %v339
        %488 = vmatpush1.msra.mxu0 %v338
        %489 = vmatprep.subr.mxu0 %v343
        %490 = vmatpush1.msra.mxu0 %v342
        %491 = vmatprep.subr.mxu0 %v347
        %492 = vmatpush1.msra.mxu0 %v346
        %493 = vmatprep.subr.mxu0 %v351
        %494 = vmatpush1.msra.mxu0 %v350
        %495 = vmatprep.subr.mxu0 %v355
        %496 = vmatpush1.msra.mxu0 %v354
        %497 = vmatprep.subr.mxu0 %v359
        %498 = vmatpush1.msra.mxu0 %v358
        %499 = vmatprep.subr.mxu0 %v363
        %500 = vmatpush1.msra.mxu0 %v362
        %501 = vmatprep.subr.mxu0 %v367
        %502 = vmatpush1.msra.mxu0 %v366
        %503 = vmatprep.subr.mxu0 %v371
        %504 = vmatpush1.msra.mxu0 %v370
        %505 = vmatprep.subr.mxu0 %v375
        %506 = vmatpush1.msra.mxu0 %v374
        %507 = vmatprep.subr.mxu0 %v379
        %508 = vmatpush1.msra.mxu0 %v378
        %509 = vmatprep.subr.mxu0 %v383
        %510 = vmatpush1.msra.mxu0 %v382
        %511 = vmatprep.subr.mxu0 %v387
        %512 = vmatpush1.msra.mxu0 %v386
        %513 = vmatprep.subr.mxu0 0.0
        %514 = vmatpush1.msra.mxu0 0.0
        %515 = vmatprep.subr.mxu0 0.0
        %516 = vmatpush1.msra.mxu0 0.0
        %517 = vmatprep.subr.mxu0 0.0
        %518 = vmatpush1.msra.mxu0 0.0
        %519 = vmatprep.subr.mxu0 0.0
        %520 = vmatpush1.msra.mxu0 0.0
        %521 = vmatprep.subr.mxu0 0.0
        %522 = vmatpush1.msra.mxu0 0.0
        %523 = vmatprep.subr.mxu0 0.0
        %524 = vmatpush1.msra.mxu0 0.0
        %525 = vmatprep.subr.mxu0 0.0
        %526 = vmatpush1.msra.mxu0 0.0
        %527 = vmatprep.subr.mxu0 0.0
        %528 = vmatpush1.msra.mxu0 0.0
        %529 = vmatprep.subr.mxu0 0.0
        %530 = vmatpush1.msra.mxu0 0.0
        %531 = vmatprep.subr.mxu0 0.0
        %532 = vmatpush1.msra.mxu0 0.0
        %533 = vmatprep.subr.mxu0 0.0
        %534 = vmatpush1.msra.mxu0 0.0
        %535 = vmatprep.subr.mxu0 0.0
        %536 = vmatpush1.msra.mxu0 0.0
        %537 = vmatprep.subr.mxu0 0.0
        %538 = vmatpush1.msra.mxu0 0.0
        %539 = vmatprep.subr.mxu0 0.0
        %540 = vmatpush1.msra.mxu0 0.0
        %541 = vmatprep.subr.mxu0 0.0
        %542 = vmatpush1.msra.mxu0 0.0
        %543 = vmatprep.subr.mxu0 0.0
        %544 = vmatpush1.msra.mxu0 0.0
        %545 = vmatprep.mubr.f32.mxu0 0.0
        %546 = vmatmul.mubr.f32.gmra.mrb[0].mxu0 %v323
        %v547 = vpop.f32.mrb[0].mxu0
        %v548 = vadd.f32 %v401, %v547
        %v549 = vpop.f32.mrb[0].mxu0
        %v550 = vadd.f32 %v405, %v549
        %551 = vdwg.mxu0
        %v552 = vmul.f32 %v477, 0.5
        %v553 = vmul.f32 %v479, 0.5
        %v554 = vmul.f32 %v548, 0.5
        %v555 = vmul.f32 %v550, 0.5
        %v556 = vmul.f32 %v477, 0.70710677
        %v557 = vmul.f32 %v479, 0.70710677
        %v558 = vmul.f32 %v548, 0.70710677
        %v559 = vmul.f32 %v550, 0.70710677
        %v560 = vand.u32 2147483647, %v556
        %v561 = vand.u32 2147483647, %v557
        %v562 = vand.u32 2147483647, %v558
        %v563 = vand.u32 2147483647, %v559
        %v564 = vmul.f32 %v560, 0.3275911
        %v565 = vmul.f32 %v561, 0.3275911
        %v566 = vmul.f32 %v562, 0.3275911
        %v567 = vmul.f32 %v563, 0.3275911
        %v568 = vadd.f32 %v564, 1.0
        %v569 = vadd.f32 %v565, 1.0
        %v570 = vadd.f32 %v566, 1.0
        %v571 = vadd.f32 %v567, 1.0
        %v572 = vrcp.pop %v568
        %v573 = vmul.f32 1.0, %v572
        %v574 = vrcp.pop %v569
        %v575 = vmul.f32 1.0, %v574
        %v576 = vrcp.pop %v570
        %v577 = vmul.f32 1.0, %v576
        %v578 = vrcp.pop %v571
        %v579 = vmul.f32 1.0, %v578
        %v580 = vmul.f32 %v573, 1.0614054
        %v581 = vmul.f32 %v575, 1.0614054
        %v582 = vmul.f32 %v577, 1.0614054
        %v583 = vmul.f32 %v579, 1.0614054
        %v584 = vadd.f32 %v580, -1.4531521
        %v585 = vadd.f32 %v581, -1.4531521
        %v586 = vadd.f32 %v582, -1.4531521
        %v587 = vadd.f32 %v583, -1.4531521
        %v588 = vmul.f32 %v584, %v573
        %v589 = vmul.f32 %v585, %v575
        %v590 = vmul.f32 %v586, %v577
        %v591 = vmul.f32 %v587, %v579
        %v592 = vadd.f32 %v588, 1.4214138
        %v593 = vadd.f32 %v589, 1.4214138
        %v594 = vadd.f32 %v590, 1.4214138
        %v595 = vadd.f32 %v591, 1.4214138
        %v596 = vmul.f32 %v592, %v573
        %v597 = vmul.f32 %v593, %v575
        %v598 = vmul.f32 %v594, %v577
        %v599 = vmul.f32 %v595, %v579
        %v600 = vadd.f32 %v596, -0.28449672
        %v601 = vadd.f32 %v597, -0.28449672
        %v602 = vadd.f32 %v598, -0.28449672
        %v603 = vadd.f32 %v599, -0.28449672
        %v604 = vmul.f32 %v600, %v573
        %v605 = vmul.f32 %v601, %v575
        %v606 = vmul.f32 %v602, %v577
        %v607 = vmul.f32 %v603, %v579
        %v608 = vadd.f32 %v604, 0.2548296
        %v609 = vadd.f32 %v605, 0.2548296
        %v610 = vadd.f32 %v606, 0.2548296
        %v611 = vadd.f32 %v607, 0.2548296
        %v612 = vmul.f32 %v608, %v573
        %v613 = vmul.f32 %v609, %v575
        %v614 = vmul.f32 %v610, %v577
        %v615 = vmul.f32 %v611, %v579
        %v616 = vsub.f32 0.0, %v560
        %v617 = vsub.f32 0.0, %v561
        %v618 = vsub.f32 0.0, %v562
        %v619 = vsub.f32 0.0, %v563
        %v620 = vmul.f32 %v616, %v560
        %v621 = vmul.f32 %v617, %v561
        %v622 = vmul.f32 %v618, %v562
        %v623 = vmul.f32 %v619, %v563
        %v624 = vmul.f32 %v620, 1.442695
        %v625 = vpow.pop %v624
        %v626 = vmul.f32 %v621, 1.442695
        %v627 = vpow.pop %v626
        %v628 = vmul.f32 %v622, 1.442695
        %v629 = vpow.pop %v628
        %v630 = vmul.f32 %v623, 1.442695
        %v631 = vpow.pop %v630
        %v632 = vmul.f32 %v612, %v625
        %v633 = vmul.f32 %v613, %v627
        %v634 = vmul.f32 %v614, %v629
        %v635 = vmul.f32 %v615, %v631
        %v636 = vsub.f32 1.0, %v632
        %v637 = vsub.f32 1.0, %v633
        %v638 = vsub.f32 1.0, %v634
        %v639 = vsub.f32 1.0, %v635
        %vm640 = vcmp.lt.f32.partialorder %v556, 0.0
        %vm641 = vcmp.lt.f32.partialorder %v557, 0.0
        %vm642 = vcmp.lt.f32.partialorder %v558, 0.0
        %vm643 = vcmp.lt.f32.partialorder %v559, 0.0
        %v644 = vsub.f32 0.0, %v636
        %v645 = vsub.f32 0.0, %v637
        %v646 = vsub.f32 0.0, %v638
        %v647 = vsub.f32 0.0, %v639
        %v648 = vsel %vm640, %v644, %v636
        %v649 = vsel %vm641, %v645, %v637
        %v650 = vsel %vm642, %v646, %v638
        %v651 = vsel %vm643, %v647, %v639
        %v652 = vadd.f32 %v648, 1.0
        %v653 = vadd.f32 %v649, 1.0
        %v654 = vadd.f32 %v650, 1.0
        %v655 = vadd.f32 %v651, 1.0
        %v656 = vmul.f32 %v552, %v652
        %v657 = vmul.f32 %v553, %v653
        %v658 = vmul.f32 %v554, %v654
        %v659 = vmul.f32 %v555, %v655
        %v660 = vld [vmem:[#allocation2] sm:$0xff]
        %v661 = vld [vmem:[#allocation8] sm:$0xff]
        %v662 = vld [vmem:[#allocation8 + $0x8] sm:$0xff]
        %v663 = vld [vmem:[#allocation8 + $0x10] sm:$0xff]
        %v664 = vld [vmem:[#allocation8 + $0x18] sm:$0xff]
        %v665 = vld [vmem:[#allocation8 + $0x20] sm:$0xff]
        %v666 = vld [vmem:[#allocation8 + $0x28] sm:$0xff]
        %v667 = vld [vmem:[#allocation8 + $0x30] sm:$0xff]
        %v668 = vld [vmem:[#allocation8 + $0x38] sm:$0xff]
        %v669 = vld [vmem:[#allocation8 + $0x40] sm:$0xff]
        %v670 = vld [vmem:[#allocation8 + $0x48] sm:$0xff]
        %v671 = vld [vmem:[#allocation8 + $0x50] sm:$0xff]
        %v672 = vld [vmem:[#allocation8 + $0x58] sm:$0xff]
        %v673 = vld [vmem:[#allocation8 + $0x60] sm:$0xff]
        %v674 = vld [vmem:[#allocation8 + $0x68] sm:$0xff]
        %v675 = vld [vmem:[#allocation8 + $0x70] sm:$0xff]
        %v676 = vld [vmem:[#allocation8 + $0x78] sm:$0xff]
        %v677 = vld [vmem:[#allocation8 + $0x80] sm:$0xff]
        %v678 = vld [vmem:[#allocation8 + $0x88] sm:$0xff]
        %v679 = vld [vmem:[#allocation8 + $0x90] sm:$0xff]
        %v680 = vld [vmem:[#allocation8 + $0x98] sm:$0xff]
        %v681 = vld [vmem:[#allocation8 + $0xa0] sm:$0xff]
        %v682 = vld [vmem:[#allocation8 + $0xa8] sm:$0xff]
        %v683 = vld [vmem:[#allocation8 + $0xb0] sm:$0xff]
        %v684 = vld [vmem:[#allocation8 + $0xb8] sm:$0xff]
        %v685 = vld [vmem:[#allocation8 + $0xc0] sm:$0xff]
        %v686 = vld [vmem:[#allocation8 + $0xc8] sm:$0xff]
        %v687 = vld [vmem:[#allocation8 + $0xd0] sm:$0xff]
        %v688 = vld [vmem:[#allocation8 + $0xd8] sm:$0xff]
        %v689 = vld [vmem:[#allocation8 + $0xe0] sm:$0xff]
        %v690 = vld [vmem:[#allocation8 + $0xe8] sm:$0xff]
        %v691 = vld [vmem:[#allocation8 + $0xf0] sm:$0xff]
        %v692 = vld [vmem:[#allocation8 + $0xf8] sm:$0xff]
        %v693 = vld [vmem:[#allocation8 + $0x100] sm:$0xff]
        %v694 = vld [vmem:[#allocation8 + $0x108] sm:$0xff]
        %v695 = vld [vmem:[#allocation8 + $0x110] sm:$0xff]
        %v696 = vld [vmem:[#allocation8 + $0x118] sm:$0xff]
        %v697 = vld [vmem:[#allocation8 + $0x120] sm:$0xff]
        %v698 = vld [vmem:[#allocation8 + $0x128] sm:$0xff]
        %v699 = vld [vmem:[#allocation8 + $0x130] sm:$0xff]
        %v700 = vld [vmem:[#allocation8 + $0x138] sm:$0xff]
        %v701 = vld [vmem:[#allocation8 + $0x140] sm:$0xff]
        %v702 = vld [vmem:[#allocation8 + $0x148] sm:$0xff]
        %v703 = vld [vmem:[#allocation8 + $0x150] sm:$0xff]
        %v704 = vld [vmem:[#allocation8 + $0x158] sm:$0xff]
        %v705 = vld [vmem:[#allocation8 + $0x160] sm:$0xff]
        %v706 = vld [vmem:[#allocation8 + $0x168] sm:$0xff]
        %v707 = vld [vmem:[#allocation8 + $0x170] sm:$0xff]
        %v708 = vld [vmem:[#allocation8 + $0x178] sm:$0xff]
        %v709 = vld [vmem:[#allocation8 + $0x180] sm:$0xff]
        %v710 = vld [vmem:[#allocation8 + $0x188] sm:$0xff]
        %v711 = vld [vmem:[#allocation8 + $0x190] sm:$0xff]
        %v712 = vld [vmem:[#allocation8 + $0x198] sm:$0xff]
        %v713 = vld [vmem:[#allocation8 + $0x1a0] sm:$0xff]
        %v714 = vld [vmem:[#allocation8 + $0x1a8] sm:$0xff]
        %v715 = vld [vmem:[#allocation8 + $0x1b0] sm:$0xff]
        %v716 = vld [vmem:[#allocation8 + $0x1b8] sm:$0xff]
        %v717 = vld [vmem:[#allocation8 + $0x1c0] sm:$0xff]
        %v718 = vld [vmem:[#allocation8 + $0x1c8] sm:$0xff]
        %v719 = vld [vmem:[#allocation8 + $0x1d0] sm:$0xff]
        %v720 = vld [vmem:[#allocation8 + $0x1d8] sm:$0xff]
        %v721 = vld [vmem:[#allocation8 + $0x1e0] sm:$0xff]
        %v722 = vld [vmem:[#allocation8 + $0x1e8] sm:$0xff]
        %v723 = vld [vmem:[#allocation8 + $0x1f0] sm:$0xff]
        %v724 = vld [vmem:[#allocation8 + $0x1f8] sm:$0xff]
        %725 = vmatprep.subr.mxu0 0.0
        %726 = vmatpush1.msra.mxu0 %v661
        %727 = vmatprep.subr.mxu0 0.0
        %728 = vmatpush1.msra.mxu0 %v662
        %729 = vmatprep.subr.mxu0 0.0
        %730 = vmatpush1.msra.mxu0 %v663
        %731 = vmatprep.subr.mxu0 0.0
        %732 = vmatpush1.msra.mxu0 %v664
        %733 = vmatprep.subr.mxu0 0.0
        %734 = vmatpush1.msra.mxu0 %v665
        %735 = vmatprep.subr.mxu0 0.0
        %736 = vmatpush1.msra.mxu0 %v666
        %737 = vmatprep.subr.mxu0 0.0
        %738 = vmatpush1.msra.mxu0 %v667
        %739 = vmatprep.subr.mxu0 0.0
        %740 = vmatpush1.msra.mxu0 %v668
        %741 = vmatprep.subr.mxu0 0.0
        %742 = vmatpush1.msra.mxu0 %v669
        %743 = vmatprep.subr.mxu0 0.0
        %744 = vmatpush1.msra.mxu0 %v670
        %745 = vmatprep.subr.mxu0 0.0
        %746 = vmatpush1.msra.mxu0 %v671
        %747 = vmatprep.subr.mxu0 0.0
        %748 = vmatpush1.msra.mxu0 %v672
        %749 = vmatprep.subr.mxu0 0.0
        %750 = vmatpush1.msra.mxu0 %v673
        %751 = vmatprep.subr.mxu0 0.0
        %752 = vmatpush1.msra.mxu0 %v674
        %753 = vmatprep.subr.mxu0 0.0
        %754 = vmatpush1.msra.mxu0 %v675
        %755 = vmatprep.subr.mxu0 0.0
        %756 = vmatpush1.msra.mxu0 %v676
        %757 = vmatprep.subr.mxu0 0.0
        %758 = vmatpush1.msra.mxu0 %v677
        %759 = vmatprep.subr.mxu0 0.0
        %760 = vmatpush1.msra.mxu0 %v678
        %761 = vmatprep.subr.mxu0 0.0
        %762 = vmatpush1.msra.mxu0 %v679
        %763 = vmatprep.subr.mxu0 0.0
        %764 = vmatpush1.msra.mxu0 %v680
        %765 = vmatprep.subr.mxu0 0.0
        %766 = vmatpush1.msra.mxu0 %v681
        %767 = vmatprep.subr.mxu0 0.0
        %768 = vmatpush1.msra.mxu0 %v682
        %769 = vmatprep.subr.mxu0 0.0
        %770 = vmatpush1.msra.mxu0 %v683
        %771 = vmatprep.subr.mxu0 0.0
        %772 = vmatpush1.msra.mxu0 %v684
        %773 = vmatprep.subr.mxu0 0.0
        %774 = vmatpush1.msra.mxu0 %v685
        %775 = vmatprep.subr.mxu0 0.0
        %776 = vmatpush1.msra.mxu0 %v686
        %777 = vmatprep.subr.mxu0 0.0
        %778 = vmatpush1.msra.mxu0 %v687
        %779 = vmatprep.subr.mxu0 0.0
        %780 = vmatpush1.msra.mxu0 %v688
        %781 = vmatprep.subr.mxu0 0.0
        %782 = vmatpush1.msra.mxu0 %v689
        %783 = vmatprep.subr.mxu0 0.0
        %784 = vmatpush1.msra.mxu0 %v690
        %785 = vmatprep.subr.mxu0 0.0
        %786 = vmatpush1.msra.mxu0 %v691
        %787 = vmatprep.subr.mxu0 0.0
        %788 = vmatpush1.msra.mxu0 %v692
        %789 = vmatprep.mubr.f32.mxu0 %v657
        %790 = vmatmul.mubr.f32.gmra.mrb[0].mxu0 %v656
        %v791 = vpop.f32.mrb[0].mxu0
        %v792 = vadd.f32 0.0, %v791
        %v793 = vpop.f32.mrb[0].mxu0
        %794 = vdwg.mxu0
        %795 = vmatprep.subr.mxu0 0.0
        %796 = vmatpush1.msra.mxu0 %v693
        %797 = vmatprep.subr.mxu0 0.0
        %798 = vmatpush1.msra.mxu0 %v694
        %799 = vmatprep.subr.mxu0 0.0
        %800 = vmatpush1.msra.mxu0 %v695
        %801 = vmatprep.subr.mxu0 0.0
        %802 = vmatpush1.msra.mxu0 %v696
        %803 = vmatprep.subr.mxu0 0.0
        %804 = vmatpush1.msra.mxu0 %v697
        %805 = vmatprep.subr.mxu0 0.0
        %806 = vmatpush1.msra.mxu0 %v698
        %807 = vmatprep.subr.mxu0 0.0
        %808 = vmatpush1.msra.mxu0 %v699
        %809 = vmatprep.subr.mxu0 0.0
        %810 = vmatpush1.msra.mxu0 %v700
        %811 = vmatprep.subr.mxu0 0.0
        %812 = vmatpush1.msra.mxu0 %v701
        %813 = vmatprep.subr.mxu0 0.0
        %814 = vmatpush1.msra.mxu0 %v702
        %815 = vmatprep.subr.mxu0 0.0
        %816 = vmatpush1.msra.mxu0 %v703
        %817 = vmatprep.subr.mxu0 0.0
        %818 = vmatpush1.msra.mxu0 %v704
        %819 = vmatprep.subr.mxu0 0.0
        %820 = vmatpush1.msra.mxu0 %v705
        %821 = vmatprep.subr.mxu0 0.0
        %822 = vmatpush1.msra.mxu0 %v706
        %823 = vmatprep.subr.mxu0 0.0
        %824 = vmatpush1.msra.mxu0 %v707
        %825 = vmatprep.subr.mxu0 0.0
        %826 = vmatpush1.msra.mxu0 %v708
        %827 = vmatprep.subr.mxu0 0.0
        %828 = vmatpush1.msra.mxu0 %v709
        %829 = vmatprep.subr.mxu0 0.0
        %830 = vmatpush1.msra.mxu0 %v710
        %831 = vmatprep.subr.mxu0 0.0
        %832 = vmatpush1.msra.mxu0 %v711
        %833 = vmatprep.subr.mxu0 0.0
        %834 = vmatpush1.msra.mxu0 %v712
        %835 = vmatprep.subr.mxu0 0.0
        %836 = vmatpush1.msra.mxu0 %v713
        %837 = vmatprep.subr.mxu0 0.0
        %838 = vmatpush1.msra.mxu0 %v714
        %839 = vmatprep.subr.mxu0 0.0
        %840 = vmatpush1.msra.mxu0 %v715
        %841 = vmatprep.subr.mxu0 0.0
        %842 = vmatpush1.msra.mxu0 %v716
        %843 = vmatprep.subr.mxu0 0.0
        %844 = vmatpush1.msra.mxu0 %v717
        %845 = vmatprep.subr.mxu0 0.0
        %846 = vmatpush1.msra.mxu0 %v718
        %847 = vmatprep.subr.mxu0 0.0
        %848 = vmatpush1.msra.mxu0 %v719
        %849 = vmatprep.subr.mxu0 0.0
        %850 = vmatpush1.msra.mxu0 %v720
        %851 = vmatprep.subr.mxu0 0.0
        %852 = vmatpush1.msra.mxu0 %v721
        %853 = vmatprep.subr.mxu0 0.0
        %854 = vmatpush1.msra.mxu0 %v722
        %855 = vmatprep.subr.mxu0 0.0
        %856 = vmatpush1.msra.mxu0 %v723
        %857 = vmatprep.subr.mxu0 0.0
        %858 = vmatpush1.msra.mxu0 %v724
        %859 = vmatprep.mubr.f32.mxu0 %v659
        %860 = vmatmul.mubr.f32.gmra.mrb[0].mxu0 %v658
        %v861 = vpop.f32.mrb[0].mxu0
        %v862 = vadd.f32 %v792, %v861
        %v863 = vpop.f32.mrb[0].mxu0
        %864 = vdwg.mxu0
        %v865 = vadd.f32 %v660, %v862
        %866 = vst [vmem:[#allocation2] sm:$0xff] %v865
        // Predicated region
        $region57: #{tpu_custom_call.1} parent=39 // pred_check
          %p867 = pneg %p318
        $region58: #{tpu_custom_call.1} parent=39 // pred_check_branch
          %869 = sbr.rel (%p867) target = $region60
        $region59: #{tpu_custom_call.1} parent=39 // pred_region
          %v870 = vld [vmem:[#allocation2] sm:$0xff]
          %v871 = vld [vmem:[%s4] sm:$0x1]
          %v873 = vlaneseq
          %v874 = vshrl.u32 %v873, 7
          %v875 = vsub.s32 0, %v874
          %v876 = vrot.slane %v871, %v875
          %v878 = vadd.f32 %v870, %v876
          %879 = vst [vmem:[%s310] sm:$0xff] %v878
        $region60: #{tpu_custom_call.1} parent=39 // pred_fallthru
          _
        %s880 = sand.u32 %s168, 1
        %s881 = scalar_lea.sflag [#allocation5], %s880
        %s882 = sand.u32 %s168, 1
        %s883 = smul.addr %s882, 8
        %s884 = scalar_lea.vmem [#allocation9], %s883
        // Predicated region
        $region61: #{tpu_custom_call.1} parent=39 // pred_check
          %p885 = pneg %p178
        $region62: #{tpu_custom_call.1} parent=39 // pred_check_branch
          %887 = sbr.rel (%p885) target = $region64
        $region63: #{tpu_custom_call.1} parent=39 // pred_region
          %s889 = ssub.s32 128, 128
          %890 = vsyncadd %s881, %s889
          %s891 = smul.addr %s27, 128
          %s892 = scalar_lea.hbm %s5, %s891
          %s894 = sshll.u32 %s884, 4
          %s895 = int_to_ptr.vmem [resolvable:$true] %s894
          %897 = dma.vmem_to_hbm [thread:$0]  %s895, 128, %s892, %s881
        $region64: #{tpu_custom_call.1} parent=39 // pred_fallthru
          _
      $region40: #{tpu_custom_call.1} parent=5 // pred_fallthru
        _
      %p898 = scmp.le.s32.totalorder 2, %s18
      // Predicated region
      $region65: #{tpu_custom_call.1} parent=5 // pred_check
        %p899 = pneg %p898
      $region66: #{tpu_custom_call.1} parent=5 // pred_check_branch
        %901 = sbr.rel (%p899) target = $region68
      $region67: #{tpu_custom_call.1} parent=5 // pred_region
        %s902 = ssub.s32 %s18, 2
        // Predicated region
        $region69: #{tpu_custom_call.1} parent=67 // pred_check
          %p903 = pneg %p184
        $region70: #{tpu_custom_call.1} parent=67 // pred_check_branch
          %905 = sbr.rel (%p903) target = $region72
        $region71: #{tpu_custom_call.1} parent=67 // pred_region
          %s906 = sand.u32 %s169, 1
          %s907 = scalar_lea.sflag [#allocation5], %s906
          %s908 = sand.u32 %s169, 1
          %s909 = smul.addr %s908, 8
          %s910 = scalar_lea.vmem [#allocation9], %s909
          %911 = dma.done %s907, 128
        $region72: #{tpu_custom_call.1} parent=67 // pred_fallthru
          _
      $region68: #{tpu_custom_call.1} parent=5 // pred_fallthru
        _
    $region6: #{tpu_custom_call.1} parent=1 // loop_footer
      %s22 = sadd.s32 1, %s18
    $region7: #{tpu_custom_call.1} parent=1 // loop_footer_branch
      %17 = sbr.rel target = $region3
    $region8: #{tpu_custom_call.1} parent=1 // loop_exit
      _
    %912 = vsyncpa [#allocation4], 1
    %s913 = scalar_lea.sflag [#allocation4], 1
    %914 = vsyncpa %s913, 1
    %915 = vsyncpa [#allocation7], 1
    %916 = vsyncpa [#allocation5], 1
    %s917 = scalar_lea.sflag [#allocation5], 1
    %918 = vsyncpa %s917, 1

</llo_original>
